<compile_context>
chip_gen: v7x
topology: tpu7x:2x2x1
jax: 0.10.0
libtpu: 0.0.40
codegen_flags: <defaults>
</compile_context>

<pallas_src>
import jax
import jax.numpy as jnp
from jax.experimental import pallas as pl
from jax.experimental.pallas import tpu as pltpu

EPS = 1e-5    # nn.LayerNorm default eps
LANE = 128    # TPU lane width


def _round_up(n, m):
    return ((n + m - 1) // m) * m


def _pad_to(a, shape):
    return jnp.pad(a, [(0, t - s) for s, t in zip(a.shape, shape)])


def _masked_layernorm(h, gamma, beta, true_dim):
    """LayerNorm over the last axis using only the first `true_dim` columns.

    Assumes padded columns of `h` are exactly zero (zero-padded weights/bias)
    and padded gamma/beta are zero, so padded output columns stay zero.
    Matches PyTorch LayerNorm (biased variance, eps=1e-5).
    """
    padded_dim = h.shape[-1]
    if padded_dim == true_dim:
        mu = jnp.mean(h, axis=-1, keepdims=True)
        d = h - mu
        var = jnp.mean(d * d, axis=-1, keepdims=True)
    else:
        mu = jnp.sum(h, axis=-1, keepdims=True) * (1.0 / true_dim)
        col = jax.lax.broadcasted_iota(jnp.int32, h.shape, h.ndim - 1)
        d = jnp.where(col < true_dim, h - mu, 0.0)
        var = jnp.sum(d * d, axis=-1, keepdims=True) * (1.0 / true_dim)
    inv = jax.lax.rsqrt(var + EPS)
    return d * inv * gamma + beta


def _make_mlp_kernel(hidden_dim, outputs_dim):
    def mlp_kernel(x_ref,
                   w1_ref, b1_ref, g1_ref, be1_ref,
                   w2_ref, b2_ref, g2_ref, be2_ref,
                   w3_ref, b3_ref,
                   o_ref):
        x = x_ref[...]  # already f32; no extra cast pass

        # fc1 + LayerNorm + ReLU (+ dropout == identity in eval)
        h = jnp.dot(x, w1_ref[...], preferred_element_type=jnp.float32) + b1_ref[...]
        h = _masked_layernorm(h, g1_ref[...], be1_ref[...], hidden_dim)
        h = jnp.maximum(h, 0.0)

        # fc2 + LayerNorm + ReLU
        h = jnp.dot(h, w2_ref[...], preferred_element_type=jnp.float32) + b2_ref[...]
        h = _masked_layernorm(h, g2_ref[...], be2_ref[...], outputs_dim)
        h = jnp.maximum(h, 0.0)

        # fc3
        out = jnp.dot(h, w3_ref[...], preferred_element_type=jnp.float32) + b3_ref[...]
        o_ref[...] = out.astype(o_ref.dtype)

    return mlp_kernel


def mlp_forward(x, params, *, block_batch=256):
    (w1, b1, g1, be1, w2, b2, g2, be2, w3, b3) = params
    batch, inputs_dim = x.shape
    hidden_dim = w1.shape[1]
    outputs_dim = w2.shape[1]
    num_class = w3.shape[1]

    # Lane-dense padding of every feature dim.
    din_p = _round_up(inputs_dim, LANE)
    h_p = _round_up(hidden_dim, LANE)
    o_p = _round_up(outputs_dim, LANE)
    c_p = _round_up(num_class, LANE)

    # Batch tile: multiple of 8 sublanes; padded batch is a multiple of the tile.
    tb = min(block_batch, _round_up(batch, 8))
    batch_p = _round_up(batch, tb)

    row = lambda a, d: _pad_to(a.reshape(1, -1), (1, d))
    x_p = _pad_to(x, (batch_p, din_p))
    w1_p, b1_p = _pad_to(w1, (din_p, h_p)), row(b1, h_p)
    g1_p, be1_p = row(g1, h_p), row(be1, h_p)
    w2_p, b2_p = _pad_to(w2, (h_p, o_p)), row(b2, o_p)
    g2_p, be2_p = row(g2, o_p), row(be2, o_p)
    w3_p, b3_p = _pad_to(w3, (o_p, c_p)), row(b3, c_p)

    # Constant index_map -> block stays VMEM-resident across batch tiles.
    const = lambda a: pl.BlockSpec(a.shape, lambda i: (0,) * a.ndim)
    weight_operands = (w1_p, b1_p, g1_p, be1_p, w2_p, b2_p, g2_p, be2_p, w3_p, b3_p)

    out_p = pl.pallas_call(
        _make_mlp_kernel(hidden_dim, outputs_dim),
        out_shape=jax.ShapeDtypeStruct((batch_p, c_p), jnp.float32),
        grid=(pl.cdiv(batch_p, tb),),
        in_specs=[pl.BlockSpec((tb, din_p), lambda i: (i, 0))]
                 + [const(a) for a in weight_operands],
        out_specs=pl.BlockSpec((tb, c_p), lambda i: (i, 0)),
        compiler_params=pltpu.CompilerParams(
            dimension_semantics=("parallel",)),
    )(x_p, *weight_operands)

    return out_p[:batch, :num_class]


def init_params(key, inputs_dim, hidden_dim, outputs_dim, num_class):
    ks = jax.random.split(key, 6)

    def lin(kw, kb, fan_in, fan_out):
        bound = 1.0 / jnp.sqrt(fan_in)
        w = jax.random.uniform(kw, (fan_in, fan_out), jnp.float32, -bound, bound)
        b = jax.random.uniform(kb, (fan_out,), jnp.float32, -bound, bound)
        return w, b

    w1, b1 = lin(ks[0], ks[1], inputs_dim, hidden_dim)
    w2, b2 = lin(ks[2], ks[3], hidden_dim, outputs_dim)
    w3, b3 = lin(ks[4], ks[5], outputs_dim, num_class)

    g1 = jnp.ones((hidden_dim,), jnp.float32)
    be1 = jnp.zeros((hidden_dim,), jnp.float32)
    g2 = jnp.ones((outputs_dim,), jnp.float32)
    be2 = jnp.zeros((outputs_dim,), jnp.float32)
    return (w1, b1, g1, be1, w2, b2, g2, be2, w3, b3)


if __name__ == "__main__":
    batch, inputs_dim, hidden_dim, outputs_dim, num_class = 8, 32, 64, 32, 8

    key = jax.random.PRNGKey(0)
    k_x, k_p = jax.random.split(key)
    x = jax.random.normal(k_x, (batch, inputs_dim), jnp.float32)
    params = init_params(k_p, inputs_dim, hidden_dim, outputs_dim, num_class)

    out = mlp_forward(x, params)
    jax.block_until_ready(out)

    # Plain-JAX reference on the unpadded math.
    w1, b1, g1, be1, w2, b2, g2, be2, w3, b3 = params

    def ln(h, g, b):
        mu = h.mean(-1, keepdims=True)
        var = ((h - mu) ** 2).mean(-1, keepdims=True)
        return (h - mu) / jnp.sqrt(var + EPS) * g + b

    h = jnp.maximum(ln(x @ w1 + b1, g1, be1), 0.0)
    h = jnp.maximum(ln(h @ w2 + b2, g2, be2), 0.0)
    ref = h @ w3 + b3

    assert out.shape == ref.shape, f"shape mismatch {out.shape} vs {ref.shape}"
    assert jnp.allclose(out, ref, atol=1e-4, rtol=1e-4), "mismatch vs reference"

    print("KERNEL_OK")
</pallas_src>

<mosaic_0001>
module attributes {stable_mosaic.version = 11 : i64} {
  func.func @mlp_kernel(%arg0: i32, %arg1: memref<8x128xf32, #tpu.memory_space<vmem>>, %arg2: memref<128x128xf32, #tpu.memory_space<vmem>>, %arg3: memref<1x128xf32, #tpu.memory_space<vmem>>, %arg4: memref<1x128xf32, #tpu.memory_space<vmem>>, %arg5: memref<1x128xf32, #tpu.memory_space<vmem>>, %arg6: memref<128x128xf32, #tpu.memory_space<vmem>>, %arg7: memref<1x128xf32, #tpu.memory_space<vmem>>, %arg8: memref<1x128xf32, #tpu.memory_space<vmem>>, %arg9: memref<1x128xf32, #tpu.memory_space<vmem>>, %arg10: memref<128x128xf32, #tpu.memory_space<vmem>>, %arg11: memref<1x128xf32, #tpu.memory_space<vmem>>, %arg12: memref<8x128xf32, #tpu.memory_space<vmem>>) attributes {dimension_semantics = [#tpu.dimension_semantics<parallel>], iteration_bounds = array<i64: 1>, scalar_prefetch = 0 : i64, scratch_operands = 0 : i64, tpu.core_type = #tpu.core_type<tc>, window_params = [{transform_indices = @transform_0, window_bounds = array<i64: 8, 128>}, {pipeline_mode = #tpu.pipeline_mode<synchronous>, transform_indices = @transform_1, window_bounds = array<i64: 128, 128>}, {pipeline_mode = #tpu.pipeline_mode<synchronous>, transform_indices = @transform_2, window_bounds = array<i64: 1, 128>}, {pipeline_mode = #tpu.pipeline_mode<synchronous>, transform_indices = @transform_3, window_bounds = array<i64: 1, 128>}, {pipeline_mode = #tpu.pipeline_mode<synchronous>, transform_indices = @transform_4, window_bounds = array<i64: 1, 128>}, {pipeline_mode = #tpu.pipeline_mode<synchronous>, transform_indices = @transform_5, window_bounds = array<i64: 128, 128>}, {pipeline_mode = #tpu.pipeline_mode<synchronous>, transform_indices = @transform_6, window_bounds = array<i64: 1, 128>}, {pipeline_mode = #tpu.pipeline_mode<synchronous>, transform_indices = @transform_7, window_bounds = array<i64: 1, 128>}, {pipeline_mode = #tpu.pipeline_mode<synchronous>, transform_indices = @transform_8, window_bounds = array<i64: 1, 128>}, {pipeline_mode = #tpu.pipeline_mode<synchronous>, transform_indices = @transform_9, window_bounds = array<i64: 128, 128>}, {pipeline_mode = #tpu.pipeline_mode<synchronous>, transform_indices = @transform_10, window_bounds = array<i64: 1, 128>}, {transform_indices = @transform_11, window_bounds = array<i64: 8, 128>}]} {
    %c0 = arith.constant 0 : index
    %c0_0 = arith.constant 0 : index
    %0 = vector.load %arg1[%c0, %c0_0] : memref<8x128xf32, #tpu.memory_space<vmem>>, vector<8x128xf32>
    %c0_1 = arith.constant 0 : index
    %c0_2 = arith.constant 0 : index
    %1 = vector.load %arg2[%c0_1, %c0_2] : memref<128x128xf32, #tpu.memory_space<vmem>>, vector<128x128xf32>
    %cst = arith.constant dense<0.000000e+00> : vector<8x128xf32>
    %2 = tpu.matmul %0, %1, %cst {dimension_numbers = #tpu.dot_dimension_numbers<[1], [0], [0], [1], [0, 0, 1, 1], [], []>} : vector<8x128xf32>, vector<128x128xf32>, vector<8x128xf32> -> vector<8x128xf32>
    %c0_3 = arith.constant 0 : index
    %c0_4 = arith.constant 0 : index
    %3 = vector.load %arg3[%c0_3, %c0_4] : memref<1x128xf32, #tpu.memory_space<vmem>>, vector<1x128xf32>
    %4 = vector.broadcast %3 : vector<1x128xf32> to vector<8x128xf32>
    %5 = arith.addf %2, %4 : vector<8x128xf32>
    %c0_5 = arith.constant 0 : index
    %c0_6 = arith.constant 0 : index
    %6 = vector.load %arg4[%c0_5, %c0_6] : memref<1x128xf32, #tpu.memory_space<vmem>>, vector<1x128xf32>
    %c0_7 = arith.constant 0 : index
    %c0_8 = arith.constant 0 : index
    %7 = vector.load %arg5[%c0_7, %c0_8] : memref<1x128xf32, #tpu.memory_space<vmem>>, vector<1x128xf32>
    %cst_9 = arith.constant dense<0.000000e+00> : vector<8xf32>
    %8 = vector.multi_reduction <add>, %5, %cst_9 [1] : vector<8x128xf32> to vector<8xf32>
    %9 = vector.shape_cast %8 : vector<8xf32> to vector<8x1xf32>
    %cst_10 = arith.constant 1.562500e-02 : f32
    %10 = vector.broadcast %cst_10 : f32 to vector<8x1xf32>
    %11 = arith.mulf %9, %10 : vector<8x1xf32>
    %12 = tpu.iota {dimensions = array<i32: 1>} : vector<8x128xi32>
    %c64_i32 = arith.constant 64 : i32
    %13 = vector.broadcast %c64_i32 : i32 to vector<8x128xi32>
    %14 = arith.cmpi slt, %12, %13 : vector<8x128xi32>
    %15 = vector.broadcast %11 : vector<8x1xf32> to vector<8x128xf32>
    %16 = arith.subf %5, %15 : vector<8x128xf32>
    %cst_11 = arith.constant 0.000000e+00 : f32
    %17 = vector.broadcast %cst_11 : f32 to vector<8x128xf32>
    %18 = arith.select %14, %16, %17 : vector<8x128xi1>, vector<8x128xf32>
    %19 = arith.mulf %18, %18 : vector<8x128xf32>
    %cst_12 = arith.constant dense<0.000000e+00> : vector<8xf32>
    %20 = vector.multi_reduction <add>, %19, %cst_12 [1] : vector<8x128xf32> to vector<8xf32>
    %21 = vector.shape_cast %20 : vector<8xf32> to vector<8x1xf32>
    %cst_13 = arith.constant 1.562500e-02 : f32
    %22 = vector.broadcast %cst_13 : f32 to vector<8x1xf32>
    %23 = arith.mulf %21, %22 : vector<8x1xf32>
    %cst_14 = arith.constant 9.99999974E-6 : f32
    %24 = vector.broadcast %cst_14 : f32 to vector<8x1xf32>
    %25 = arith.addf %23, %24 : vector<8x1xf32>
    %26 = math.rsqrt %25 : vector<8x1xf32>
    %27 = vector.broadcast %26 : vector<8x1xf32> to vector<8x128xf32>
    %28 = arith.mulf %18, %27 : vector<8x128xf32>
    %29 = vector.broadcast %6 : vector<1x128xf32> to vector<8x128xf32>
    %30 = arith.mulf %28, %29 : vector<8x128xf32>
    %31 = vector.broadcast %7 : vector<1x128xf32> to vector<8x128xf32>
    %32 = arith.addf %30, %31 : vector<8x128xf32>
    %cst_15 = arith.constant 0.000000e+00 : f32
    %33 = vector.broadcast %cst_15 : f32 to vector<8x128xf32>
    %34 = arith.maximumf %32, %33 : vector<8x128xf32>
    %c0_16 = arith.constant 0 : index
    %c0_17 = arith.constant 0 : index
    %35 = vector.load %arg6[%c0_16, %c0_17] : memref<128x128xf32, #tpu.memory_space<vmem>>, vector<128x128xf32>
    %cst_18 = arith.constant dense<0.000000e+00> : vector<8x128xf32>
    %36 = tpu.matmul %34, %35, %cst_18 {dimension_numbers = #tpu.dot_dimension_numbers<[1], [0], [0], [1], [0, 0, 1, 1], [], []>} : vector<8x128xf32>, vector<128x128xf32>, vector<8x128xf32> -> vector<8x128xf32>
    %c0_19 = arith.constant 0 : index
    %c0_20 = arith.constant 0 : index
    %37 = vector.load %arg7[%c0_19, %c0_20] : memref<1x128xf32, #tpu.memory_space<vmem>>, vector<1x128xf32>
    %38 = vector.broadcast %37 : vector<1x128xf32> to vector<8x128xf32>
    %39 = arith.addf %36, %38 : vector<8x128xf32>
    %c0_21 = arith.constant 0 : index
    %c0_22 = arith.constant 0 : index
    %40 = vector.load %arg8[%c0_21, %c0_22] : memref<1x128xf32, #tpu.memory_space<vmem>>, vector<1x128xf32>
    %c0_23 = arith.constant 0 : index
    %c0_24 = arith.constant 0 : index
    %41 = vector.load %arg9[%c0_23, %c0_24] : memref<1x128xf32, #tpu.memory_space<vmem>>, vector<1x128xf32>
    %cst_25 = arith.constant dense<0.000000e+00> : vector<8xf32>
    %42 = vector.multi_reduction <add>, %39, %cst_25 [1] : vector<8x128xf32> to vector<8xf32>
    %43 = vector.shape_cast %42 : vector<8xf32> to vector<8x1xf32>
    %cst_26 = arith.constant 3.125000e-02 : f32
    %44 = vector.broadcast %cst_26 : f32 to vector<8x1xf32>
    %45 = arith.mulf %43, %44 : vector<8x1xf32>
    %46 = tpu.iota {dimensions = array<i32: 1>} : vector<8x128xi32>
    %c32_i32 = arith.constant 32 : i32
    %47 = vector.broadcast %c32_i32 : i32 to vector<8x128xi32>
    %48 = arith.cmpi slt, %46, %47 : vector<8x128xi32>
    %49 = vector.broadcast %45 : vector<8x1xf32> to vector<8x128xf32>
    %50 = arith.subf %39, %49 : vector<8x128xf32>
    %cst_27 = arith.constant 0.000000e+00 : f32
    %51 = vector.broadcast %cst_27 : f32 to vector<8x128xf32>
    %52 = arith.select %48, %50, %51 : vector<8x128xi1>, vector<8x128xf32>
    %53 = arith.mulf %52, %52 : vector<8x128xf32>
    %cst_28 = arith.constant dense<0.000000e+00> : vector<8xf32>
    %54 = vector.multi_reduction <add>, %53, %cst_28 [1] : vector<8x128xf32> to vector<8xf32>
    %55 = vector.shape_cast %54 : vector<8xf32> to vector<8x1xf32>
    %cst_29 = arith.constant 3.125000e-02 : f32
    %56 = vector.broadcast %cst_29 : f32 to vector<8x1xf32>
    %57 = arith.mulf %55, %56 : vector<8x1xf32>
    %cst_30 = arith.constant 9.99999974E-6 : f32
    %58 = vector.broadcast %cst_30 : f32 to vector<8x1xf32>
    %59 = arith.addf %57, %58 : vector<8x1xf32>
    %60 = math.rsqrt %59 : vector<8x1xf32>
    %61 = vector.broadcast %60 : vector<8x1xf32> to vector<8x128xf32>
    %62 = arith.mulf %52, %61 : vector<8x128xf32>
    %63 = vector.broadcast %40 : vector<1x128xf32> to vector<8x128xf32>
    %64 = arith.mulf %62, %63 : vector<8x128xf32>
    %65 = vector.broadcast %41 : vector<1x128xf32> to vector<8x128xf32>
    %66 = arith.addf %64, %65 : vector<8x128xf32>
    %cst_31 = arith.constant 0.000000e+00 : f32
    %67 = vector.broadcast %cst_31 : f32 to vector<8x128xf32>
    %68 = arith.maximumf %66, %67 : vector<8x128xf32>
    %c0_32 = arith.constant 0 : index
    %c0_33 = arith.constant 0 : index
    %69 = vector.load %arg10[%c0_32, %c0_33] : memref<128x128xf32, #tpu.memory_space<vmem>>, vector<128x128xf32>
    %cst_34 = arith.constant dense<0.000000e+00> : vector<8x128xf32>
    %70 = tpu.matmul %68, %69, %cst_34 {dimension_numbers = #tpu.dot_dimension_numbers<[1], [0], [0], [1], [0, 0, 1, 1], [], []>} : vector<8x128xf32>, vector<128x128xf32>, vector<8x128xf32> -> vector<8x128xf32>
    %c0_35 = arith.constant 0 : index
    %c0_36 = arith.constant 0 : index
    %71 = vector.load %arg11[%c0_35, %c0_36] : memref<1x128xf32, #tpu.memory_space<vmem>>, vector<1x128xf32>
    %72 = vector.broadcast %71 : vector<1x128xf32> to vector<8x128xf32>
    %73 = arith.addf %70, %72 : vector<8x128xf32>
    %c0_37 = arith.constant 0 : index
    %c0_38 = arith.constant 0 : index
    %74 = vector.load %arg12[%c0_37, %c0_38] : memref<8x128xf32, #tpu.memory_space<vmem>>, vector<8x128xf32>
    tpu.vector_store %arg12[%c0_37, %c0_38], %73 {strides = array<i32>} : memref<8x128xf32, #tpu.memory_space<vmem>>, vector<8x128xf32>,
    return
  }
  func.func @transform_0(%arg0: i32) -> (i32, i32) {
    %c0_i32 = arith.constant 0 : i32
    %c0_i32_0 = arith.constant 0 : i32
    return %arg0, %c0_i32 : i32, i32
  }
  func.func @transform_1(%arg0: i32) -> (i32, i32) {
    %c0_i32 = arith.constant 0 : i32
    %c0_i32_0 = arith.constant 0 : i32
    %c0_i32_1 = arith.constant 0 : i32
    return %c0_i32, %c0_i32_0 : i32, i32
  }
  func.func @transform_2(%arg0: i32) -> (i32, i32) {
    %c0_i32 = arith.constant 0 : i32
    %c0_i32_0 = arith.constant 0 : i32
    %c0_i32_1 = arith.constant 0 : i32
    return %c0_i32, %c0_i32_0 : i32, i32
  }
  func.func @transform_3(%arg0: i32) -> (i32, i32) {
    %c0_i32 = arith.constant 0 : i32
    %c0_i32_0 = arith.constant 0 : i32
    %c0_i32_1 = arith.constant 0 : i32
    return %c0_i32, %c0_i32_0 : i32, i32
  }
  func.func @transform_4(%arg0: i32) -> (i32, i32) {
    %c0_i32 = arith.constant 0 : i32
    %c0_i32_0 = arith.constant 0 : i32
    %c0_i32_1 = arith.constant 0 : i32
    return %c0_i32, %c0_i32_0 : i32, i32
  }
  func.func @transform_5(%arg0: i32) -> (i32, i32) {
    %c0_i32 = arith.constant 0 : i32
    %c0_i32_0 = arith.constant 0 : i32
    %c0_i32_1 = arith.constant 0 : i32
    return %c0_i32, %c0_i32_0 : i32, i32
  }
  func.func @transform_6(%arg0: i32) -> (i32, i32) {
    %c0_i32 = arith.constant 0 : i32
    %c0_i32_0 = arith.constant 0 : i32
    %c0_i32_1 = arith.constant 0 : i32
    return %c0_i32, %c0_i32_0 : i32, i32
  }
  func.func @transform_7(%arg0: i32) -> (i32, i32) {
    %c0_i32 = arith.constant 0 : i32
    %c0_i32_0 = arith.constant 0 : i32
    %c0_i32_1 = arith.constant 0 : i32
    return %c0_i32, %c0_i32_0 : i32, i32
  }
  func.func @transform_8(%arg0: i32) -> (i32, i32) {
    %c0_i32 = arith.constant 0 : i32
    %c0_i32_0 = arith.constant 0 : i32
    %c0_i32_1 = arith.constant 0 : i32
    return %c0_i32, %c0_i32_0 : i32, i32
  }
  func.func @transform_9(%arg0: i32) -> (i32, i32) {
    %c0_i32 = arith.constant 0 : i32
    %c0_i32_0 = arith.constant 0 : i32
    %c0_i32_1 = arith.constant 0 : i32
    return %c0_i32, %c0_i32_0 : i32, i32
  }
  func.func @transform_10(%arg0: i32) -> (i32, i32) {
    %c0_i32 = arith.constant 0 : i32
    %c0_i32_0 = arith.constant 0 : i32
    %c0_i32_1 = arith.constant 0 : i32
    return %c0_i32, %c0_i32_0 : i32, i32
  }
  func.func @transform_11(%arg0: i32) -> (i32, i32) {
    %c0_i32 = arith.constant 0 : i32
    %c0_i32_0 = arith.constant 0 : i32
    return %arg0, %c0_i32 : i32, i32
  }
}

</mosaic_0001>

<llo_original>
// kernel: tpu_custom_call.1
$region0: #{tpu_custom_call.1}
  #allocation0 [shape = 'u32[]', space=smem, size = 0x4, offset = 0x4, fixed_abs, tag = 'smem constant byte address 0x4 - core index']
  #allocation1 [shape = 'u32[144,128]{1,0:T(1,128)}', space=vmem, size = 0x12000, scoped, tag = 'internal scratch']
  %s0 = inlined_call_operand.hbm [shape: f32[8,128], index: 0, kind: input, shape index: {}]
  %s1 = inlined_call_operand.hbm [shape: f32[128,128], index: 1, kind: input, shape index: {}]
  %s2 = inlined_call_operand.vmem [shape: f32[1,128], index: 2, kind: input, shape index: {}]
  %s3 = inlined_call_operand.vmem [shape: f32[1,128], index: 3, kind: input, shape index: {}]
  %s4 = inlined_call_operand.vmem [shape: f32[1,128], index: 4, kind: input, shape index: {}]
  %s5 = inlined_call_operand.hbm [shape: f32[128,128], index: 5, kind: input, shape index: {}]
  %s6 = inlined_call_operand.vmem [shape: f32[1,128], index: 6, kind: input, shape index: {}]
  %s7 = inlined_call_operand.vmem [shape: f32[1,128], index: 7, kind: input, shape index: {}]
  %s8 = inlined_call_operand.vmem [shape: f32[1,128], index: 8, kind: input, shape index: {}]
  %s9 = inlined_call_operand.hbm [shape: f32[128,128], index: 9, kind: input, shape index: {}]
  %s10 = inlined_call_operand.vmem [shape: f32[1,128], index: 10, kind: input, shape index: {}]
  %s11 = inlined_call_operand.hbm [shape: f32[8,128], index: 11, kind: output, shape index: {}]
  %s12 = sld [smem:[#allocation0]]
  $region70: #{tpu_custom_call.1} parent=0
    _
  %s14 = ssub.s32 1, %s12
  %s15 = scalar_select 0, %s14, %s12
  $region1: #{tpu_custom_call.1} parent=0
    #allocation2 [shape = 'u8[4096]{0}', space=vmem, size = 0x1000, scoped, tag = 'input window, operand 0, single buffered']
    #allocation3 [shape = 's32[1]{0}', space=sflag, size = 0x4, scoped, tag = 'scoped memory for tpu_custom_call.1']
    #allocation4 [shape = 's32[1]{0}', space=sflag, size = 0x4, scoped, tag = 'scoped memory for tpu_custom_call.1']
    #allocation5 [shape = 'u8[65536]{0}', space=vmem, size = 0x10000, scoped, tag = 'input window, operand 1, single buffered']
    #allocation6 [shape = 's32[1]{0}', space=sflag, size = 0x4, scoped, tag = 'scoped memory for tpu_custom_call.1']
    #allocation7 [shape = 'u8[65536]{0}', space=vmem, size = 0x10000, scoped, tag = 'input window, operand 5, single buffered']
    #allocation8 [shape = 'u8[65536]{0}', space=vmem, size = 0x10000, scoped, tag = 'input window, operand 9, single buffered']
    #allocation9 [shape = 's32[1]{0}', space=sflag, size = 0x4, scoped, tag = 'scoped memory for tpu_custom_call.1']
    #allocation10 [shape = 'u8[4096]{0}', space=vmem, size = 0x1000, scoped, tag = 'output window, operand 0, single buffered']
    %16 = vsyncpa [#allocation3], 0
    %17 = vsyncpa [#allocation6], 0
    %18 = vsyncpa [#allocation9], 0
    %19 = vsyncpa [#allocation4], 0
    // Predicated region
    $region2: #{tpu_custom_call.1} parent=1 // pred_check
      _
    $region3: #{tpu_custom_call.1} parent=1 // pred_check_branch
      %21 = sbr.rel (0) target = $region5
    $region4: #{tpu_custom_call.1} parent=1 // pred_region
      %s23 = ssub.s32 128, 128
      %24 = vsyncadd [#allocation3], %s23
      %s26 = sshll.u32 [#allocation2], 4
      %s27 = int_to_ptr.vmem [resolvable:$true] %s26
      %29 = dma.hbm_to_vmem [thread:$0]  %s0, 128, %s27, [#allocation3]
    $region5: #{tpu_custom_call.1} parent=1 // pred_fallthru
      _
    // Predicated region
    $region6: #{tpu_custom_call.1} parent=1 // pred_check
      _
    $region7: #{tpu_custom_call.1} parent=1 // pred_check_branch
      %31 = sbr.rel (0) target = $region9
    $region8: #{tpu_custom_call.1} parent=1 // pred_region
      %s33 = ssub.s32 2048, 2048
      %34 = vsyncadd [#allocation6], %s33
      %s35 = sshll.u32 [#allocation5], 4
      %s36 = int_to_ptr.vmem [resolvable:$true] %s35
      %41 = dma.hbm_to_vmem [thread:$0]  %s1, 2048, %s36, [#allocation6], 128, 128, 8
    $region9: #{tpu_custom_call.1} parent=1 // pred_fallthru
      _
    // Predicated region
    $region10: #{tpu_custom_call.1} parent=1 // pred_check
      _
    $region11: #{tpu_custom_call.1} parent=1 // pred_check_branch
      %43 = sbr.rel (0) target = $region13
    $region12: #{tpu_custom_call.1} parent=1 // pred_region
      _
    $region13: #{tpu_custom_call.1} parent=1 // pred_fallthru
      _
    // Predicated region
    $region14: #{tpu_custom_call.1} parent=1 // pred_check
      _
    $region15: #{tpu_custom_call.1} parent=1 // pred_check_branch
      %45 = sbr.rel (0) target = $region17
    $region16: #{tpu_custom_call.1} parent=1 // pred_region
      _
    $region17: #{tpu_custom_call.1} parent=1 // pred_fallthru
      _
    // Predicated region
    $region18: #{tpu_custom_call.1} parent=1 // pred_check
      _
    $region19: #{tpu_custom_call.1} parent=1 // pred_check_branch
      %47 = sbr.rel (0) target = $region21
    $region20: #{tpu_custom_call.1} parent=1 // pred_region
      _
    $region21: #{tpu_custom_call.1} parent=1 // pred_fallthru
      _
    // Predicated region
    $region22: #{tpu_custom_call.1} parent=1 // pred_check
      _
    $region23: #{tpu_custom_call.1} parent=1 // pred_check_branch
      %49 = sbr.rel (0) target = $region25
    $region24: #{tpu_custom_call.1} parent=1 // pred_region
      %s51 = ssub.s32 2048, 2048
      %52 = vsyncadd [#allocation6], %s51
      %s53 = sshll.u32 [#allocation7], 4
      %s54 = int_to_ptr.vmem [resolvable:$true] %s53
      %59 = dma.hbm_to_vmem [thread:$0]  %s5, 2048, %s54, [#allocation6], 128, 128, 8
    $region25: #{tpu_custom_call.1} parent=1 // pred_fallthru
      _
    // Predicated region
    $region26: #{tpu_custom_call.1} parent=1 // pred_check
      _
    $region27: #{tpu_custom_call.1} parent=1 // pred_check_branch
      %61 = sbr.rel (0) target = $region29
    $region28: #{tpu_custom_call.1} parent=1 // pred_region
      _
    $region29: #{tpu_custom_call.1} parent=1 // pred_fallthru
      _
    // Predicated region
    $region30: #{tpu_custom_call.1} parent=1 // pred_check
      _
    $region31: #{tpu_custom_call.1} parent=1 // pred_check_branch
      %63 = sbr.rel (0) target = $region33
    $region32: #{tpu_custom_call.1} parent=1 // pred_region
      _
    $region33: #{tpu_custom_call.1} parent=1 // pred_fallthru
      _
    // Predicated region
    $region34: #{tpu_custom_call.1} parent=1 // pred_check
      _
    $region35: #{tpu_custom_call.1} parent=1 // pred_check_branch
      %65 = sbr.rel (0) target = $region37
    $region36: #{tpu_custom_call.1} parent=1 // pred_region
      _
    $region37: #{tpu_custom_call.1} parent=1 // pred_fallthru
      _
    // Predicated region
    $region38: #{tpu_custom_call.1} parent=1 // pred_check
      _
    $region39: #{tpu_custom_call.1} parent=1 // pred_check_branch
      %67 = sbr.rel (0) target = $region41
    $region40: #{tpu_custom_call.1} parent=1 // pred_region
      %s69 = ssub.s32 2048, 2048
      %70 = vsyncadd [#allocation9], %s69
      %s71 = sshll.u32 [#allocation8], 4
      %s72 = int_to_ptr.vmem [resolvable:$true] %s71
      %77 = dma.hbm_to_vmem [thread:$0]  %s9, 2048, %s72, [#allocation9], 128, 128, 8
    $region41: #{tpu_custom_call.1} parent=1 // pred_fallthru
      _
    // Predicated region
    $region42: #{tpu_custom_call.1} parent=1 // pred_check
      _
    $region43: #{tpu_custom_call.1} parent=1 // pred_check_branch
      %79 = sbr.rel (0) target = $region45
    $region44: #{tpu_custom_call.1} parent=1 // pred_region
      _
    $region45: #{tpu_custom_call.1} parent=1 // pred_fallthru
      _
    // Predicated region
    $region46: #{tpu_custom_call.1} parent=1 // pred_check
      _
    $region47: #{tpu_custom_call.1} parent=1 // pred_check_branch
      %81 = sbr.rel (0) target = $region49
    $region48: #{tpu_custom_call.1} parent=1 // pred_region
      %82 = dma.done [#allocation3], 128
    $region49: #{tpu_custom_call.1} parent=1 // pred_fallthru
      _
    // Predicated region
    $region50: #{tpu_custom_call.1} parent=1 // pred_check
      _
    $region51: #{tpu_custom_call.1} parent=1 // pred_check_branch
      %84 = sbr.rel (0) target = $region53
    $region52: #{tpu_custom_call.1} parent=1 // pred_region
      %85 = dma.done [#allocation6], 2048
    $region53: #{tpu_custom_call.1} parent=1 // pred_fallthru
      _
    // Predicated region
    $region54: #{tpu_custom_call.1} parent=1 // pred_check
      _
    $region55: #{tpu_custom_call.1} parent=1 // pred_check_branch
      %87 = sbr.rel (0) target = $region57
    $region56: #{tpu_custom_call.1} parent=1 // pred_region
      %88 = dma.done [#allocation6], 2048
    $region57: #{tpu_custom_call.1} parent=1 // pred_fallthru
      _
    // Predicated region
    $region58: #{tpu_custom_call.1} parent=1 // pred_check
      _
    $region59: #{tpu_custom_call.1} parent=1 // pred_check_branch
      %90 = sbr.rel (0) target = $region61
    $region60: #{tpu_custom_call.1} parent=1 // pred_region
      %91 = dma.done [#allocation9], 2048
    $region61: #{tpu_custom_call.1} parent=1 // pred_fallthru
      _
    %v92 = vld [vmem:[#allocation2] sm:$0xff]
    %v93 = vld [vmem:[#allocation5] sm:$0xff]
    %v94 = vld [vmem:[#allocation5 + $0x8] sm:$0xff]
    %v95 = vld [vmem:[#allocation5 + $0x10] sm:$0xff]
    %v96 = vld [vmem:[#allocation5 + $0x18] sm:$0xff]
    %v97 = vld [vmem:[#allocation5 + $0x20] sm:$0xff]
    %v98 = vld [vmem:[#allocation5 + $0x28] sm:$0xff]
    %v99 = vld [vmem:[#allocation5 + $0x30] sm:$0xff]
    %v100 = vld [vmem:[#allocation5 + $0x38] sm:$0xff]
    %v101 = vld [vmem:[#allocation5 + $0x40] sm:$0xff]
    %v102 = vld [vmem:[#allocation5 + $0x48] sm:$0xff]
    %v103 = vld [vmem:[#allocation5 + $0x50] sm:$0xff]
    %v104 = vld [vmem:[#allocation5 + $0x58] sm:$0xff]
    %v105 = vld [vmem:[#allocation5 + $0x60] sm:$0xff]
    %v106 = vld [vmem:[#allocation5 + $0x68] sm:$0xff]
    %v107 = vld [vmem:[#allocation5 + $0x70] sm:$0xff]
    %v108 = vld [vmem:[#allocation5 + $0x78] sm:$0xff]
    %v109 = vld [vmem:[%s2] sm:$0x1]
    %v111 = vlaneseq
    %v112 = vshrl.u32 %v111, 7
    %v113 = vsub.s32 0, %v112
    %v114 = vrot.slane %v109, %v113
    %116 = vmatprep.subr.mxu0 0.0
    %117 = vmatpush1.msra.mxu0 %v93
    %118 = vmatprep.subr.mxu0 0.0
    %119 = vmatpush1.msra.mxu0 %v94
    %120 = vmatprep.subr.mxu0 0.0
    %121 = vmatpush1.msra.mxu0 %v95
    %122 = vmatprep.subr.mxu0 0.0
    %123 = vmatpush1.msra.mxu0 %v96
    %124 = vmatprep.subr.mxu0 0.0
    %125 = vmatpush1.msra.mxu0 %v97
    %126 = vmatprep.subr.mxu0 0.0
    %127 = vmatpush1.msra.mxu0 %v98
    %128 = vmatprep.subr.mxu0 0.0
    %129 = vmatpush1.msra.mxu0 %v99
    %130 = vmatprep.subr.mxu0 0.0
    %131 = vmatpush1.msra.mxu0 %v100
    %132 = vmatprep.subr.mxu0 0.0
    %133 = vmatpush1.msra.mxu0 %v101
    %134 = vmatprep.subr.mxu0 0.0
    %135 = vmatpush1.msra.mxu0 %v102
    %136 = vmatprep.subr.mxu0 0.0
    %137 = vmatpush1.msra.mxu0 %v103
    %138 = vmatprep.subr.mxu0 0.0
    %139 = vmatpush1.msra.mxu0 %v104
    %140 = vmatprep.subr.mxu0 0.0
    %141 = vmatpush1.msra.mxu0 %v105
    %142 = vmatprep.subr.mxu0 0.0
    %143 = vmatpush1.msra.mxu0 %v106
    %144 = vmatprep.subr.mxu0 0.0
    %145 = vmatpush1.msra.mxu0 %v107
    %146 = vmatprep.subr.mxu0 0.0
    %147 = vmatpush1.msra.mxu0 %v108
    %148 = vmatprep.subr.mxu0 0.0
    %149 = vmatpush1.msra.mxu0 0.0
    %150 = vmatprep.subr.mxu0 0.0
    %151 = vmatpush1.msra.mxu0 0.0
    %152 = vmatprep.subr.mxu0 0.0
    %153 = vmatpush1.msra.mxu0 0.0
    %154 = vmatprep.subr.mxu0 0.0
    %155 = vmatpush1.msra.mxu0 0.0
    %156 = vmatprep.subr.mxu0 0.0
    %157 = vmatpush1.msra.mxu0 0.0
    %158 = vmatprep.subr.mxu0 0.0
    %159 = vmatpush1.msra.mxu0 0.0
    %160 = vmatprep.subr.mxu0 0.0
    %161 = vmatpush1.msra.mxu0 0.0
    %162 = vmatprep.subr.mxu0 0.0
    %163 = vmatpush1.msra.mxu0 0.0
    %164 = vmatprep.subr.mxu0 0.0
    %165 = vmatpush1.msra.mxu0 0.0
    %166 = vmatprep.subr.mxu0 0.0
    %167 = vmatpush1.msra.mxu0 0.0
    %168 = vmatprep.subr.mxu0 0.0
    %169 = vmatpush1.msra.mxu0 0.0
    %170 = vmatprep.subr.mxu0 0.0
    %171 = vmatpush1.msra.mxu0 0.0
    %172 = vmatprep.subr.mxu0 0.0
    %173 = vmatpush1.msra.mxu0 0.0
    %174 = vmatprep.subr.mxu0 0.0
    %175 = vmatpush1.msra.mxu0 0.0
    %176 = vmatprep.subr.mxu0 0.0
    %177 = vmatpush1.msra.mxu0 0.0
    %178 = vmatprep.subr.mxu0 0.0
    %179 = vmatpush1.msra.mxu0 0.0
    %180 = vmatprep.mubr.f32.mxu0 0.0
    %181 = vmatmul.mubr.f32.gmra.mrb[0].mxu0 %v92
    %v182 = vpop.f32.mrb[0].mxu0
    %v183 = vadd.f32 %v114, %v182
    %v184 = vpop.f32.mrb[0].mxu0
    %185 = vdwg.mxu0
    %v186 = vld [vmem:[%s3] sm:$0x1]
    %v187 = vld [vmem:[%s4] sm:$0x1]
    %188 = vadd.xlane.f32.xlu0 %v183
    %v189 = vpop.xlane.xlu0 %188
    %v190 = vmul.f32 %v189, 0.015625
    %v191 = vlaneseq
    %v192 = vand.u32 %v191, 127
    %vm193 = vcmp.lt.s32.totalorder %v192, 64
    %v194 = vsub.f32 %v183, %v190
    %v195 = vsel %vm193, %v194, 0.0
    %v196 = vmul.f32 %v195, %v195
    %197 = vadd.xlane.f32.xlu0 %v196
    %v198 = vpop.xlane.xlu0 %197
    %v199 = vmul.f32 %v198, 0.015625
    %v200 = vadd.f32 %v199, 1e-05
    %v201 = vrsqrt.pop %v200
    %v202 = vmul.f32 %v195, %v201
    %v204 = vlaneseq
    %v205 = vshrl.u32 %v204, 7
    %v206 = vsub.s32 0, %v205
    %v207 = vrot.slane %v186, %v206
    %v209 = vmul.f32 %v202, %v207
    %v211 = vlaneseq
    %v212 = vshrl.u32 %v211, 7
    %v213 = vsub.s32 0, %v212
    %v214 = vrot.slane %v187, %v213
    %v216 = vadd.f32 %v209, %v214
    %v217 = vmax.f32 %v216, 0.0
    %v218 = vld [vmem:[#allocation7] sm:$0xff]
    %v219 = vld [vmem:[#allocation7 + $0x8] sm:$0xff]
    %v220 = vld [vmem:[#allocation7 + $0x10] sm:$0xff]
    %v221 = vld [vmem:[#allocation7 + $0x18] sm:$0xff]
    %v222 = vld [vmem:[#allocation7 + $0x20] sm:$0xff]
    %v223 = vld [vmem:[#allocation7 + $0x28] sm:$0xff]
    %v224 = vld [vmem:[#allocation7 + $0x30] sm:$0xff]
    %v225 = vld [vmem:[#allocation7 + $0x38] sm:$0xff]
    %v226 = vld [vmem:[#allocation7 + $0x40] sm:$0xff]
    %v227 = vld [vmem:[#allocation7 + $0x48] sm:$0xff]
    %v228 = vld [vmem:[#allocation7 + $0x50] sm:$0xff]
    %v229 = vld [vmem:[#allocation7 + $0x58] sm:$0xff]
    %v230 = vld [vmem:[#allocation7 + $0x60] sm:$0xff]
    %v231 = vld [vmem:[#allocation7 + $0x68] sm:$0xff]
    %v232 = vld [vmem:[#allocation7 + $0x70] sm:$0xff]
    %v233 = vld [vmem:[#allocation7 + $0x78] sm:$0xff]
    %v234 = vld [vmem:[%s6] sm:$0x1]
    %v236 = vlaneseq
    %v237 = vshrl.u32 %v236, 7
    %v238 = vsub.s32 0, %v237
    %v239 = vrot.slane %v234, %v238
    %241 = vmatprep.subr.mxu0 0.0
    %242 = vmatpush1.msra.mxu0 %v218
    %243 = vmatprep.subr.mxu0 0.0
    %244 = vmatpush1.msra.mxu0 %v219
    %245 = vmatprep.subr.mxu0 0.0
    %246 = vmatpush1.msra.mxu0 %v220
    %247 = vmatprep.subr.mxu0 0.0
    %248 = vmatpush1.msra.mxu0 %v221
    %249 = vmatprep.subr.mxu0 0.0
    %250 = vmatpush1.msra.mxu0 %v222
    %251 = vmatprep.subr.mxu0 0.0
    %252 = vmatpush1.msra.mxu0 %v223
    %253 = vmatprep.subr.mxu0 0.0
    %254 = vmatpush1.msra.mxu0 %v224
    %255 = vmatprep.subr.mxu0 0.0
    %256 = vmatpush1.msra.mxu0 %v225
    %257 = vmatprep.subr.mxu0 0.0
    %258 = vmatpush1.msra.mxu0 %v226
    %259 = vmatprep.subr.mxu0 0.0
    %260 = vmatpush1.msra.mxu0 %v227
    %261 = vmatprep.subr.mxu0 0.0
    %262 = vmatpush1.msra.mxu0 %v228
    %263 = vmatprep.subr.mxu0 0.0
    %264 = vmatpush1.msra.mxu0 %v229
    %265 = vmatprep.subr.mxu0 0.0
    %266 = vmatpush1.msra.mxu0 %v230
    %267 = vmatprep.subr.mxu0 0.0
    %268 = vmatpush1.msra.mxu0 %v231
    %269 = vmatprep.subr.mxu0 0.0
    %270 = vmatpush1.msra.mxu0 %v232
    %271 = vmatprep.subr.mxu0 0.0
    %272 = vmatpush1.msra.mxu0 %v233
    %273 = vmatprep.subr.mxu0 0.0
    %274 = vmatpush1.msra.mxu0 0.0
    %275 = vmatprep.subr.mxu0 0.0
    %276 = vmatpush1.msra.mxu0 0.0
    %277 = vmatprep.subr.mxu0 0.0
    %278 = vmatpush1.msra.mxu0 0.0
    %279 = vmatprep.subr.mxu0 0.0
    %280 = vmatpush1.msra.mxu0 0.0
    %281 = vmatprep.subr.mxu0 0.0
    %282 = vmatpush1.msra.mxu0 0.0
    %283 = vmatprep.subr.mxu0 0.0
    %284 = vmatpush1.msra.mxu0 0.0
    %285 = vmatprep.subr.mxu0 0.0
    %286 = vmatpush1.msra.mxu0 0.0
    %287 = vmatprep.subr.mxu0 0.0
    %288 = vmatpush1.msra.mxu0 0.0
    %289 = vmatprep.subr.mxu0 0.0
    %290 = vmatpush1.msra.mxu0 0.0
    %291 = vmatprep.subr.mxu0 0.0
    %292 = vmatpush1.msra.mxu0 0.0
    %293 = vmatprep.subr.mxu0 0.0
    %294 = vmatpush1.msra.mxu0 0.0
    %295 = vmatprep.subr.mxu0 0.0
    %296 = vmatpush1.msra.mxu0 0.0
    %297 = vmatprep.subr.mxu0 0.0
    %298 = vmatpush1.msra.mxu0 0.0
    %299 = vmatprep.subr.mxu0 0.0
    %300 = vmatpush1.msra.mxu0 0.0
    %301 = vmatprep.subr.mxu0 0.0
    %302 = vmatpush1.msra.mxu0 0.0
    %303 = vmatprep.subr.mxu0 0.0
    %304 = vmatpush1.msra.mxu0 0.0
    %305 = vmatprep.mubr.f32.mxu0 0.0
    %306 = vmatmul.mubr.f32.gmra.mrb[0].mxu0 %v217
    %v307 = vpop.f32.mrb[0].mxu0
    %v308 = vadd.f32 %v239, %v307
    %v309 = vpop.f32.mrb[0].mxu0
    %310 = vdwg.mxu0
    %v311 = vld [vmem:[%s7] sm:$0x1]
    %v312 = vld [vmem:[%s8] sm:$0x1]
    %313 = vadd.xlane.f32.xlu0 %v308
    %v314 = vpop.xlane.xlu0 %313
    %v315 = vmul.f32 %v314, 0.03125
    %vm316 = vcmp.lt.s32.totalorder %v192, 32
    %v317 = vsub.f32 %v308, %v315
    %v318 = vsel %vm316, %v317, 0.0
    %v319 = vmul.f32 %v318, %v318
    %320 = vadd.xlane.f32.xlu0 %v319
    %v321 = vpop.xlane.xlu0 %320
    %v322 = vmul.f32 %v321, 0.03125
    %v323 = vadd.f32 %v322, 1e-05
    %v324 = vrsqrt.pop %v323
    %v325 = vmul.f32 %v318, %v324
    %v327 = vlaneseq
    %v328 = vshrl.u32 %v327, 7
    %v329 = vsub.s32 0, %v328
    %v330 = vrot.slane %v311, %v329
    %v332 = vmul.f32 %v325, %v330
    %v334 = vlaneseq
    %v335 = vshrl.u32 %v334, 7
    %v336 = vsub.s32 0, %v335
    %v337 = vrot.slane %v312, %v336
    %v339 = vadd.f32 %v332, %v337
    %v340 = vmax.f32 %v339, 0.0
    %v341 = vld [vmem:[#allocation8] sm:$0xff]
    %v342 = vld [vmem:[#allocation8 + $0x8] sm:$0xff]
    %v343 = vld [vmem:[#allocation8 + $0x10] sm:$0xff]
    %v344 = vld [vmem:[#allocation8 + $0x18] sm:$0xff]
    %v345 = vld [vmem:[#allocation8 + $0x20] sm:$0xff]
    %v346 = vld [vmem:[#allocation8 + $0x28] sm:$0xff]
    %v347 = vld [vmem:[#allocation8 + $0x30] sm:$0xff]
    %v348 = vld [vmem:[#allocation8 + $0x38] sm:$0xff]
    %v349 = vld [vmem:[#allocation8 + $0x40] sm:$0xff]
    %v350 = vld [vmem:[#allocation8 + $0x48] sm:$0xff]
    %v351 = vld [vmem:[#allocation8 + $0x50] sm:$0xff]
    %v352 = vld [vmem:[#allocation8 + $0x58] sm:$0xff]
    %v353 = vld [vmem:[#allocation8 + $0x60] sm:$0xff]
    %v354 = vld [vmem:[#allocation8 + $0x68] sm:$0xff]
    %v355 = vld [vmem:[#allocation8 + $0x70] sm:$0xff]
    %v356 = vld [vmem:[#allocation8 + $0x78] sm:$0xff]
    %v357 = vld [vmem:[%s10] sm:$0x1]
    %v359 = vlaneseq
    %v360 = vshrl.u32 %v359, 7
    %v361 = vsub.s32 0, %v360
    %v362 = vrot.slane %v357, %v361
    %364 = vmatprep.subr.mxu0 0.0
    %365 = vmatpush1.msra.mxu0 %v341
    %366 = vmatprep.subr.mxu0 0.0
    %367 = vmatpush1.msra.mxu0 %v342
    %368 = vmatprep.subr.mxu0 0.0
    %369 = vmatpush1.msra.mxu0 %v343
    %370 = vmatprep.subr.mxu0 0.0
    %371 = vmatpush1.msra.mxu0 %v344
    %372 = vmatprep.subr.mxu0 0.0
    %373 = vmatpush1.msra.mxu0 %v345
    %374 = vmatprep.subr.mxu0 0.0
    %375 = vmatpush1.msra.mxu0 %v346
    %376 = vmatprep.subr.mxu0 0.0
    %377 = vmatpush1.msra.mxu0 %v347
    %378 = vmatprep.subr.mxu0 0.0
    %379 = vmatpush1.msra.mxu0 %v348
    %380 = vmatprep.subr.mxu0 0.0
    %381 = vmatpush1.msra.mxu0 %v349
    %382 = vmatprep.subr.mxu0 0.0
    %383 = vmatpush1.msra.mxu0 %v350
    %384 = vmatprep.subr.mxu0 0.0
    %385 = vmatpush1.msra.mxu0 %v351
    %386 = vmatprep.subr.mxu0 0.0
    %387 = vmatpush1.msra.mxu0 %v352
    %388 = vmatprep.subr.mxu0 0.0
    %389 = vmatpush1.msra.mxu0 %v353
    %390 = vmatprep.subr.mxu0 0.0
    %391 = vmatpush1.msra.mxu0 %v354
    %392 = vmatprep.subr.mxu0 0.0
    %393 = vmatpush1.msra.mxu0 %v355
    %394 = vmatprep.subr.mxu0 0.0
    %395 = vmatpush1.msra.mxu0 %v356
    %396 = vmatprep.subr.mxu0 0.0
    %397 = vmatpush1.msra.mxu0 0.0
    %398 = vmatprep.subr.mxu0 0.0
    %399 = vmatpush1.msra.mxu0 0.0
    %400 = vmatprep.subr.mxu0 0.0
    %401 = vmatpush1.msra.mxu0 0.0
    %402 = vmatprep.subr.mxu0 0.0
    %403 = vmatpush1.msra.mxu0 0.0
    %404 = vmatprep.subr.mxu0 0.0
    %405 = vmatpush1.msra.mxu0 0.0
    %406 = vmatprep.subr.mxu0 0.0
    %407 = vmatpush1.msra.mxu0 0.0
    %408 = vmatprep.subr.mxu0 0.0
    %409 = vmatpush1.msra.mxu0 0.0
    %410 = vmatprep.subr.mxu0 0.0
    %411 = vmatpush1.msra.mxu0 0.0
    %412 = vmatprep.subr.mxu0 0.0
    %413 = vmatpush1.msra.mxu0 0.0
    %414 = vmatprep.subr.mxu0 0.0
    %415 = vmatpush1.msra.mxu0 0.0
    %416 = vmatprep.subr.mxu0 0.0
    %417 = vmatpush1.msra.mxu0 0.0
    %418 = vmatprep.subr.mxu0 0.0
    %419 = vmatpush1.msra.mxu0 0.0
    %420 = vmatprep.subr.mxu0 0.0
    %421 = vmatpush1.msra.mxu0 0.0
    %422 = vmatprep.subr.mxu0 0.0
    %423 = vmatpush1.msra.mxu0 0.0
    %424 = vmatprep.subr.mxu0 0.0
    %425 = vmatpush1.msra.mxu0 0.0
    %426 = vmatprep.subr.mxu0 0.0
    %427 = vmatpush1.msra.mxu0 0.0
    %428 = vmatprep.mubr.f32.mxu0 0.0
    %429 = vmatmul.mubr.f32.gmra.mrb[0].mxu0 %v340
    %v430 = vpop.f32.mrb[0].mxu0
    %v431 = vadd.f32 %v362, %v430
    %v432 = vpop.f32.mrb[0].mxu0
    %433 = vdwg.mxu0
    %434 = vst [vmem:[#allocation10] sm:$0xff] %v431
    // Predicated region
    $region62: #{tpu_custom_call.1} parent=1 // pred_check
      _
    $region63: #{tpu_custom_call.1} parent=1 // pred_check_branch
      %436 = sbr.rel (0) target = $region65
    $region64: #{tpu_custom_call.1} parent=1 // pred_region
      %s438 = ssub.s32 128, 128
      %439 = vsyncadd [#allocation4], %s438
      %s441 = sshll.u32 [#allocation10], 4
      %s442 = int_to_ptr.vmem [resolvable:$true] %s441
      %444 = dma.vmem_to_hbm [thread:$0]  %s442, 128, %s11, [#allocation4]
    $region65: #{tpu_custom_call.1} parent=1 // pred_fallthru
      _
    // Predicated region
    $region66: #{tpu_custom_call.1} parent=1 // pred_check
      _
    $region67: #{tpu_custom_call.1} parent=1 // pred_check_branch
      %446 = sbr.rel (0) target = $region69
    $region68: #{tpu_custom_call.1} parent=1 // pred_region
      %447 = dma.done [#allocation4], 128
    $region69: #{tpu_custom_call.1} parent=1 // pred_fallthru
      _
    %448 = vsyncpa [#allocation3], 1
    %449 = vsyncpa [#allocation6], 1
    %450 = vsyncpa [#allocation9], 1
    %451 = vsyncpa [#allocation4], 1

</llo_original>
